<compile_context>
chip_gen: v7x
topology: tpu7x:2x2x1
jax: 0.10.0
libtpu: 0.0.40
codegen_flags: <defaults>
</compile_context>

<pallas_src>
import functools

import jax
import jax.numpy as jnp
from jax.experimental import pallas as pl
from jax.experimental.pallas import tpu as pltpu

LANE = 128


def _round_up(n, m):
    return (n + m - 1) // m * m


def _pad_to(a, shape):
    return jnp.pad(a, [(0, t - s) for s, t in zip(a.shape, shape)])


def _mlp_kernel(x_ref, w1_ref, b1_ref, w2_ref, b2_ref, w3_ref, b3_ref, o_ref):
    cdt = w1_ref.dtype  # matmul operand dtype (bf16)

    # fc1 + ReLU: in-kernel f32 -> bf16 cast of x; MXU matmul, f32 accumulate.
    x = x_ref[...].astype(cdt)
    h = jnp.dot(x, w1_ref[...], preferred_element_type=jnp.float32)
    h = jnp.maximum(h + b1_ref[...], 0.0)

    # fc2 + ReLU
    h = jnp.dot(h.astype(cdt), w2_ref[...], preferred_element_type=jnp.float32)
    h = jnp.maximum(h + b2_ref[...], 0.0)

    # fc3 (narrow N = output_size) + Sigmoid: sigmoid(z) = 0.5*tanh(0.5*z)+0.5
    z = jnp.dot(h.astype(cdt), w3_ref[...], preferred_element_type=jnp.float32)
    z = z + b3_ref[...]
    o_ref[...] = (0.5 * jnp.tanh(0.5 * z) + 0.5).astype(o_ref.dtype)


@functools.partial(jax.jit, static_argnames=("block_batch", "compute_dtype"))
def classifier_forward(x, w1, b1, w2, b2, w3, b3, *, block_batch=1024,
                       compute_dtype=jnp.bfloat16):
    """Fused MLP forward.

    x : (B, input_size) f32
    wN: (in_features, out_features)   (torch weight transposed)
    bN: (out_features,)
    Returns (B, output_size) f32.
    """
    assert block_batch % 16 == 0, "block_batch must be a multiple of 16 sublanes"
    batch, in_size = x.shape
    h1_size, h2_size, out_size = w1.shape[1], w2.shape[1], w3.shape[1]
    assert w1.shape[0] == in_size and w2.shape[0] == h1_size and w3.shape[0] == h2_size

    # --- lane-dense hidden padding (hidden dims -> multiples of 128) ---------
    h1_p = _round_up(h1_size, LANE)
    h2_p = _round_up(h2_size, LANE)

    w1p = _pad_to(w1, (in_size, h1_p)).astype(compute_dtype)
    w2p = _pad_to(w2, (h1_p, h2_p)).astype(compute_dtype)
    w3p = _pad_to(w3, (h2_p, out_size)).astype(compute_dtype)  # N kept narrow
    b1p = _pad_to(b1.reshape(1, -1), (1, h1_p)).astype(jnp.float32)
    b2p = _pad_to(b2.reshape(1, -1), (1, h2_p)).astype(jnp.float32)
    b3p = b3.reshape(1, -1).astype(jnp.float32)

    # --- batch tiling: no explicit padding, ragged last block is masked ------
    # Multiple of 16 sublanes; capped near batch/2 so grid >= 2 steps when the
    # batch allows it (lets v7x shard the "parallel" axis across both TCs).
    tb = min(block_batch, max(16, _round_up(pl.cdiv(batch, 2), 16)))
    grid = (pl.cdiv(batch, tb),)

    resident = lambda a: pl.BlockSpec(a.shape, lambda i: (0, 0))  # stays in VMEM

    out = pl.pallas_call(
        _mlp_kernel,
        out_shape=jax.ShapeDtypeStruct((batch, out_size), jnp.float32),
        grid=grid,
        in_specs=[
            pl.BlockSpec((tb, in_size), lambda i: (i, 0)),   # x: f32, batch-tiled
            resident(w1p), resident(b1p),
            resident(w2p), resident(b2p),
            resident(w3p), resident(b3p),
        ],
        out_specs=pl.BlockSpec((tb, out_size), lambda i: (i, 0)),  # narrow store
        compiler_params=pltpu.CompilerParams(
            dimension_semantics=("parallel",)),  # batch axis shards across TCs
    )(x, w1p, b1p, w2p, b2p, w3p, b3p)

    return out


def init_linear_params(key, in_features, out_features):
    """torch.nn.Linear-style init; weight pre-transposed to (in, out), bias (out,)."""
    kw, kb = jax.random.split(key)
    bound = 1.0 / jnp.sqrt(jnp.float32(in_features))
    w = jax.random.uniform(kw, (in_features, out_features), jnp.float32, -bound, bound)
    b = jax.random.uniform(kb, (out_features,), jnp.float32, -bound, bound)
    return w, b


if __name__ == "__main__":
    # batch=300 is deliberately not a tile multiple so the ragged-last-block
    # (masked output write) path is exercised.
    batch = 300
    input_size = 32
    hidden_size = 32
    output_size = 8

    key = jax.random.PRNGKey(0)
    kx, k1, k2, k3 = jax.random.split(key, 4)

    x = jax.random.normal(kx, (batch, input_size), jnp.float32)
    w1, b1 = init_linear_params(k1, input_size, hidden_size)
    w2, b2 = init_linear_params(k2, hidden_size, hidden_size // 2)
    w3, b3 = init_linear_params(k3, hidden_size // 2, output_size)

    out = classifier_forward(x, w1, b1, w2, b2, w3, b3)
    out = jax.block_until_ready(out)
    assert out.shape == (batch, output_size)

    # Pure-JAX reference mirroring the kernel's bf16-operand / f32-accumulate matmuls.
    def ref_mlp(dtype):
        h = jnp.dot(x.astype(dtype), w1.astype(dtype), preferred_element_type=jnp.float32)
        h = jnp.maximum(h + b1, 0.0)
        h = jnp.dot(h.astype(dtype), w2.astype(dtype), preferred_element_type=jnp.float32)
        h = jnp.maximum(h + b2, 0.0)
        z = jnp.dot(h.astype(dtype), w3.astype(dtype), preferred_element_type=jnp.float32)
        return jax.nn.sigmoid(z + b3)

    ref = ref_mlp(jnp.bfloat16)
    assert jnp.allclose(out, ref, atol=5e-3, rtol=5e-3), "mismatch vs reference"

    print("KERNEL_OK")
</pallas_src>

<mosaic_0001>
module attributes {stable_mosaic.version = 11 : i64} {
  func.func @_mlp_kernel(%arg0: i32, %arg1: memref<160x32xf32, #tpu.memory_space<vmem>>, %arg2: memref<32x128xbf16, #tpu.memory_space<vmem>>, %arg3: memref<1x128xf32, #tpu.memory_space<vmem>>, %arg4: memref<128x128xbf16, #tpu.memory_space<vmem>>, %arg5: memref<1x128xf32, #tpu.memory_space<vmem>>, %arg6: memref<128x8xbf16, #tpu.memory_space<vmem>>, %arg7: memref<1x8xf32, #tpu.memory_space<vmem>>, %arg8: memref<160x8xf32, #tpu.memory_space<vmem>>) attributes {dimension_semantics = [#tpu.dimension_semantics<parallel>], iteration_bounds = array<i64: 2>, scalar_prefetch = 0 : i64, scratch_operands = 0 : i64, tpu.core_type = #tpu.core_type<tc>, window_params = [{transform_indices = @transform_0, window_bounds = array<i64: 160, 32>}, {pipeline_mode = #tpu.pipeline_mode<synchronous>, transform_indices = @transform_1, window_bounds = array<i64: 32, 128>}, {pipeline_mode = #tpu.pipeline_mode<synchronous>, transform_indices = @transform_2, window_bounds = array<i64: 1, 128>}, {pipeline_mode = #tpu.pipeline_mode<synchronous>, transform_indices = @transform_3, window_bounds = array<i64: 128, 128>}, {pipeline_mode = #tpu.pipeline_mode<synchronous>, transform_indices = @transform_4, window_bounds = array<i64: 1, 128>}, {pipeline_mode = #tpu.pipeline_mode<synchronous>, transform_indices = @transform_5, window_bounds = array<i64: 128, 8>}, {pipeline_mode = #tpu.pipeline_mode<synchronous>, transform_indices = @transform_6, window_bounds = array<i64: 1, 8>}, {transform_indices = @transform_7, window_bounds = array<i64: 160, 8>}]} {
    %c0 = arith.constant 0 : index
    %c0_0 = arith.constant 0 : index
    %0 = vector.load %arg1[%c0, %c0_0] : memref<160x32xf32, #tpu.memory_space<vmem>>, vector<160x32xf32>
    %1 = arith.truncf %0 : vector<160x32xf32> to vector<160x32xbf16>
    %c0_1 = arith.constant 0 : index
    %c0_2 = arith.constant 0 : index
    %2 = vector.load %arg2[%c0_1, %c0_2] : memref<32x128xbf16, #tpu.memory_space<vmem>>, vector<32x128xbf16>
    %cst = arith.constant dense<0.000000e+00> : vector<160x128xf32>
    %3 = tpu.matmul %1, %2, %cst {dimension_numbers = #tpu.dot_dimension_numbers<[1], [0], [0], [1], [0, 0, 1, 1], [], []>} : vector<160x32xbf16>, vector<32x128xbf16>, vector<160x128xf32> -> vector<160x128xf32>
    %c0_3 = arith.constant 0 : index
    %c0_4 = arith.constant 0 : index
    %4 = vector.load %arg3[%c0_3, %c0_4] : memref<1x128xf32, #tpu.memory_space<vmem>>, vector<1x128xf32>
    %5 = vector.broadcast %4 : vector<1x128xf32> to vector<160x128xf32>
    %6 = arith.addf %3, %5 : vector<160x128xf32>
    %cst_5 = arith.constant 0.000000e+00 : f32
    %7 = vector.broadcast %cst_5 : f32 to vector<160x128xf32>
    %8 = arith.maximumf %6, %7 : vector<160x128xf32>
    %9 = arith.truncf %8 : vector<160x128xf32> to vector<160x128xbf16>
    %c0_6 = arith.constant 0 : index
    %c0_7 = arith.constant 0 : index
    %10 = vector.load %arg4[%c0_6, %c0_7] : memref<128x128xbf16, #tpu.memory_space<vmem>>, vector<128x128xbf16>
    %cst_8 = arith.constant dense<0.000000e+00> : vector<160x128xf32>
    %11 = tpu.matmul %9, %10, %cst_8 {dimension_numbers = #tpu.dot_dimension_numbers<[1], [0], [0], [1], [0, 0, 1, 1], [], []>} : vector<160x128xbf16>, vector<128x128xbf16>, vector<160x128xf32> -> vector<160x128xf32>
    %c0_9 = arith.constant 0 : index
    %c0_10 = arith.constant 0 : index
    %12 = vector.load %arg5[%c0_9, %c0_10] : memref<1x128xf32, #tpu.memory_space<vmem>>, vector<1x128xf32>
    %13 = vector.broadcast %12 : vector<1x128xf32> to vector<160x128xf32>
    %14 = arith.addf %11, %13 : vector<160x128xf32>
    %cst_11 = arith.constant 0.000000e+00 : f32
    %15 = vector.broadcast %cst_11 : f32 to vector<160x128xf32>
    %16 = arith.maximumf %14, %15 : vector<160x128xf32>
    %17 = arith.truncf %16 : vector<160x128xf32> to vector<160x128xbf16>
    %c0_12 = arith.constant 0 : index
    %c0_13 = arith.constant 0 : index
    %18 = vector.load %arg6[%c0_12, %c0_13] : memref<128x8xbf16, #tpu.memory_space<vmem>>, vector<128x8xbf16>
    %cst_14 = arith.constant dense<0.000000e+00> : vector<160x8xf32>
    %19 = tpu.matmul %17, %18, %cst_14 {dimension_numbers = #tpu.dot_dimension_numbers<[1], [0], [0], [1], [0, 0, 1, 1], [], []>} : vector<160x128xbf16>, vector<128x8xbf16>, vector<160x8xf32> -> vector<160x8xf32>
    %c0_15 = arith.constant 0 : index
    %c0_16 = arith.constant 0 : index
    %20 = vector.load %arg7[%c0_15, %c0_16] : memref<1x8xf32, #tpu.memory_space<vmem>>, vector<1x8xf32>
    %21 = vector.broadcast %20 : vector<1x8xf32> to vector<160x8xf32>
    %22 = arith.addf %19, %21 : vector<160x8xf32>
    %cst_17 = arith.constant 5.000000e-01 : f32
    %23 = vector.broadcast %cst_17 : f32 to vector<160x8xf32>
    %24 = arith.mulf %23, %22 : vector<160x8xf32>
    %25 = math.tanh %24 : vector<160x8xf32>
    %cst_18 = arith.constant 5.000000e-01 : f32
    %26 = vector.broadcast %cst_18 : f32 to vector<160x8xf32>
    %27 = arith.mulf %26, %25 : vector<160x8xf32>
    %cst_19 = arith.constant 5.000000e-01 : f32
    %28 = vector.broadcast %cst_19 : f32 to vector<160x8xf32>
    %29 = arith.addf %27, %28 : vector<160x8xf32>
    %c0_20 = arith.constant 0 : index
    %c0_21 = arith.constant 0 : index
    %30 = vector.load %arg8[%c0_20, %c0_21] : memref<160x8xf32, #tpu.memory_space<vmem>>, vector<160x8xf32>
    tpu.vector_store %arg8[%c0_20, %c0_21], %29 {strides = array<i32>} : memref<160x8xf32, #tpu.memory_space<vmem>>, vector<160x8xf32>,
    return
  }
  func.func @transform_0(%arg0: i32) -> (i32, i32) {
    %c0_i32 = arith.constant 0 : i32
    %c0_i32_0 = arith.constant 0 : i32
    return %arg0, %c0_i32 : i32, i32
  }
  func.func @transform_1(%arg0: i32) -> (i32, i32) {
    %c0_i32 = arith.constant 0 : i32
    %c0_i32_0 = arith.constant 0 : i32
    %c0_i32_1 = arith.constant 0 : i32
    return %c0_i32, %c0_i32_0 : i32, i32
  }
  func.func @transform_2(%arg0: i32) -> (i32, i32) {
    %c0_i32 = arith.constant 0 : i32
    %c0_i32_0 = arith.constant 0 : i32
    %c0_i32_1 = arith.constant 0 : i32
    return %c0_i32, %c0_i32_0 : i32, i32
  }
  func.func @transform_3(%arg0: i32) -> (i32, i32) {
    %c0_i32 = arith.constant 0 : i32
    %c0_i32_0 = arith.constant 0 : i32
    %c0_i32_1 = arith.constant 0 : i32
    return %c0_i32, %c0_i32_0 : i32, i32
  }
  func.func @transform_4(%arg0: i32) -> (i32, i32) {
    %c0_i32 = arith.constant 0 : i32
    %c0_i32_0 = arith.constant 0 : i32
    %c0_i32_1 = arith.constant 0 : i32
    return %c0_i32, %c0_i32_0 : i32, i32
  }
  func.func @transform_5(%arg0: i32) -> (i32, i32) {
    %c0_i32 = arith.constant 0 : i32
    %c0_i32_0 = arith.constant 0 : i32
    %c0_i32_1 = arith.constant 0 : i32
    return %c0_i32, %c0_i32_0 : i32, i32
  }
  func.func @transform_6(%arg0: i32) -> (i32, i32) {
    %c0_i32 = arith.constant 0 : i32
    %c0_i32_0 = arith.constant 0 : i32
    %c0_i32_1 = arith.constant 0 : i32
    return %c0_i32, %c0_i32_0 : i32, i32
  }
  func.func @transform_7(%arg0: i32) -> (i32, i32) {
    %c0_i32 = arith.constant 0 : i32
    %c0_i32_0 = arith.constant 0 : i32
    return %arg0, %c0_i32 : i32, i32
  }
}

</mosaic_0001>

<llo_original>
// kernel: classifier_forward.1
$region0: #{classifier_forward.1}
  #allocation0 [shape = 'u32[]', space=smem, size = 0x4, offset = 0x4, fixed_abs, tag = 'smem constant byte address 0x4 - core index']
  #allocation1 [shape = 'u32[144,128]{1,0:T(1,128)}', space=vmem, size = 0x12000, scoped, tag = 'internal scratch']
  %s0 = inlined_call_operand.vmem [shape: f32[300,32], index: 0, kind: input, shape index: {}]
  %s1 = inlined_call_operand.vmem [shape: bf16[32,128], index: 1, kind: input, shape index: {}]
  %s2 = inlined_call_operand.vmem [shape: f32[1,128], index: 2, kind: input, shape index: {}]
  %s3 = inlined_call_operand.vmem [shape: bf16[128,128], index: 3, kind: input, shape index: {}]
  %s4 = inlined_call_operand.vmem [shape: f32[1,128], index: 4, kind: input, shape index: {}]
  %s5 = inlined_call_operand.vmem [shape: bf16[128,8], index: 5, kind: input, shape index: {}]
  %s6 = inlined_call_operand.vmem [shape: f32[1,8], index: 6, kind: input, shape index: {}]
  %s7 = inlined_call_operand.vmem [shape: f32[300,8], index: 7, kind: output, shape index: {}]
  %s8 = sld [smem:[#allocation0]]
  $region109: #{classifier_forward.1} parent=0
    _
  %s10 = ssub.s32 1, %s8
  %s11 = scalar_select 0, %s10, %s8
  $region1: #{classifier_forward.1} parent=0
    #allocation2 [shape = 'u8[163840]{0}', space=vmem, size = 0x28000, scoped, tag = 'output window, operand 0']
    loop: start=0, step=1, limit=4
    $region2: #{classifier_forward.1} parent=1 // loop_pre_header
      _
    $region3: #{classifier_forward.1} parent=1 // loop_header
      %s13 = sphi 0, %s17
      %p14 = scmp.ge.s32.totalorder %s13, 4
      %s23 = sphi 0, %s25
      %s26 = sphi 0, %s23
      %s27 = sphi 0, %s26
      %s43 = sphi 0, %s27
      %s47 = sphi 0, %s47
      %s49 = sphi 0, %s47
      %s50 = sphi 0, %s49
      %s64 = sphi 0, %s50
      %s68 = sphi 0, %s68
      %s70 = sphi 0, %s68
      %s71 = sphi 0, %s70
      %s85 = sphi 0, %s71
      %s89 = sphi 0, %s89
      %s91 = sphi 0, %s89
      %s92 = sphi 0, %s91
      %s106 = sphi 0, %s92
      %s110 = sphi 0, %s110
      %s112 = sphi 0, %s110
      %s113 = sphi 0, %s112
      %s127 = sphi 0, %s113
      %s131 = sphi 0, %s131
      %s133 = sphi 0, %s131
      %s134 = sphi 0, %s133
      %s148 = sphi 0, %s134
      %s152 = sphi 0, %s152
      %s154 = sphi 0, %s152
      %s155 = sphi 0, %s154
      %s169 = sphi 0, %s155
      %s175 = sphi 0, %s177
      %s178 = sphi 0, %s175
      %s179 = sphi 0, %s178
      %s195 = sphi 0, %s179
    $region4: #{classifier_forward.1} parent=1 // loop_header_branch
      %16 = sbr.rel (%p14) target = $region8
    $region5: #{classifier_forward.1} parent=1 // loop_body
      %s18 = ssub.s32 %s13, 1
      %s19 = ssub.s32 %s13, 2
      %s20 = sadd.s32 %s13, 1
      %s21 = ssub.s32 %s13, %s20
      %p22 = scmp.eq.s32.totalorder %s21, 0
      %s24 = sadd.s32 %s23, 1
      %s25 = scalar_select %p22, %s23, %s24
      %p28 = pneg %p22
      %p29 = scmp.eq.s32.totalorder %s13, 1
      %p30 = por %p28, %p29
      %p31 = scmp.ne.s32.totalorder %s23, %s26
      %p32 = scmp.eq.s32.totalorder %s13, 0
      %p33 = por %p31, %p32
      %p34 = scmp.ne.s32.totalorder %s23, %s26
      %p35 = scmp.eq.s32.totalorder %s18, 1
      %p36 = por %p34, %p35
      %p37 = scmp.ne.s32.totalorder %s26, %s27
      %p38 = scmp.eq.s32.totalorder %s18, 0
      %p39 = por %p37, %p38
      %p40 = scmp.ne.s32.totalorder %s26, %s27
      %p41 = scmp.eq.s32.totalorder %s19, 1
      %p42 = por %p40, %p41
      %p44 = scmp.ne.s32.totalorder %s27, %s43
      %p45 = scmp.eq.s32.totalorder %s19, 0
      %p46 = por %p44, %p45
      %s48 = sadd.s32 %s47, 1
      %p51 = scmp.eq.s32.totalorder %s13, 1
      %p52 = scmp.ne.s32.totalorder %s47, %s49
      %p53 = scmp.eq.s32.totalorder %s13, 0
      %p54 = por %p52, %p53
      %p55 = scmp.ne.s32.totalorder %s47, %s49
      %p56 = scmp.eq.s32.totalorder %s18, 1
      %p57 = por %p55, %p56
      %p58 = scmp.ne.s32.totalorder %s49, %s50
      %p59 = scmp.eq.s32.totalorder %s18, 0
      %p60 = por %p58, %p59
      %p61 = scmp.ne.s32.totalorder %s49, %s50
      %p62 = scmp.eq.s32.totalorder %s19, 1
      %p63 = por %p61, %p62
      %p65 = scmp.ne.s32.totalorder %s50, %s64
      %p66 = scmp.eq.s32.totalorder %s19, 0
      %p67 = por %p65, %p66
      %s69 = sadd.s32 %s68, 1
      %p72 = scmp.eq.s32.totalorder %s13, 1
      %p73 = scmp.ne.s32.totalorder %s68, %s70
      %p74 = scmp.eq.s32.totalorder %s13, 0
      %p75 = por %p73, %p74
      %p76 = scmp.ne.s32.totalorder %s68, %s70
      %p77 = scmp.eq.s32.totalorder %s18, 1
      %p78 = por %p76, %p77
      %p79 = scmp.ne.s32.totalorder %s70, %s71
      %p80 = scmp.eq.s32.totalorder %s18, 0
      %p81 = por %p79, %p80
      %p82 = scmp.ne.s32.totalorder %s70, %s71
      %p83 = scmp.eq.s32.totalorder %s19, 1
      %p84 = por %p82, %p83
      %p86 = scmp.ne.s32.totalorder %s71, %s85
      %p87 = scmp.eq.s32.totalorder %s19, 0
      %p88 = por %p86, %p87
      %s90 = sadd.s32 %s89, 1
      %p93 = scmp.eq.s32.totalorder %s13, 1
      %p94 = scmp.ne.s32.totalorder %s89, %s91
      %p95 = scmp.eq.s32.totalorder %s13, 0
      %p96 = por %p94, %p95
      %p97 = scmp.ne.s32.totalorder %s89, %s91
      %p98 = scmp.eq.s32.totalorder %s18, 1
      %p99 = por %p97, %p98
      %p100 = scmp.ne.s32.totalorder %s91, %s92
      %p101 = scmp.eq.s32.totalorder %s18, 0
      %p102 = por %p100, %p101
      %p103 = scmp.ne.s32.totalorder %s91, %s92
      %p104 = scmp.eq.s32.totalorder %s19, 1
      %p105 = por %p103, %p104
      %p107 = scmp.ne.s32.totalorder %s92, %s106
      %p108 = scmp.eq.s32.totalorder %s19, 0
      %p109 = por %p107, %p108
      %s111 = sadd.s32 %s110, 1
      %p114 = scmp.eq.s32.totalorder %s13, 1
      %p115 = scmp.ne.s32.totalorder %s110, %s112
      %p116 = scmp.eq.s32.totalorder %s13, 0
      %p117 = por %p115, %p116
      %p118 = scmp.ne.s32.totalorder %s110, %s112
      %p119 = scmp.eq.s32.totalorder %s18, 1
      %p120 = por %p118, %p119
      %p121 = scmp.ne.s32.totalorder %s112, %s113
      %p122 = scmp.eq.s32.totalorder %s18, 0
      %p123 = por %p121, %p122
      %p124 = scmp.ne.s32.totalorder %s112, %s113
      %p125 = scmp.eq.s32.totalorder %s19, 1
      %p126 = por %p124, %p125
      %p128 = scmp.ne.s32.totalorder %s113, %s127
      %p129 = scmp.eq.s32.totalorder %s19, 0
      %p130 = por %p128, %p129
      %s132 = sadd.s32 %s131, 1
      %p135 = scmp.eq.s32.totalorder %s13, 1
      %p136 = scmp.ne.s32.totalorder %s131, %s133
      %p137 = scmp.eq.s32.totalorder %s13, 0
      %p138 = por %p136, %p137
      %p139 = scmp.ne.s32.totalorder %s131, %s133
      %p140 = scmp.eq.s32.totalorder %s18, 1
      %p141 = por %p139, %p140
      %p142 = scmp.ne.s32.totalorder %s133, %s134
      %p143 = scmp.eq.s32.totalorder %s18, 0
      %p144 = por %p142, %p143
      %p145 = scmp.ne.s32.totalorder %s133, %s134
      %p146 = scmp.eq.s32.totalorder %s19, 1
      %p147 = por %p145, %p146
      %p149 = scmp.ne.s32.totalorder %s134, %s148
      %p150 = scmp.eq.s32.totalorder %s19, 0
      %p151 = por %p149, %p150
      %s153 = sadd.s32 %s152, 1
      %p156 = scmp.eq.s32.totalorder %s13, 1
      %p157 = scmp.ne.s32.totalorder %s152, %s154
      %p158 = scmp.eq.s32.totalorder %s13, 0
      %p159 = por %p157, %p158
      %p160 = scmp.ne.s32.totalorder %s152, %s154
      %p161 = scmp.eq.s32.totalorder %s18, 1
      %p162 = por %p160, %p161
      %p163 = scmp.ne.s32.totalorder %s154, %s155
      %p164 = scmp.eq.s32.totalorder %s18, 0
      %p165 = por %p163, %p164
      %p166 = scmp.ne.s32.totalorder %s154, %s155
      %p167 = scmp.eq.s32.totalorder %s19, 1
      %p168 = por %p166, %p167
      %p170 = scmp.ne.s32.totalorder %s155, %s169
      %p171 = scmp.eq.s32.totalorder %s19, 0
      %p172 = por %p170, %p171
      %s173 = ssub.s32 %s13, %s20
      %p174 = scmp.eq.s32.totalorder %s173, 0
      %s176 = sadd.s32 %s175, 1
      %s177 = scalar_select %p174, %s175, %s176
      %p180 = pneg %p174
      %p181 = scmp.eq.s32.totalorder %s13, 1
      %p182 = por %p180, %p181
      %p183 = scmp.ne.s32.totalorder %s175, %s178
      %p184 = scmp.eq.s32.totalorder %s13, 0
      %p185 = por %p183, %p184
      %p186 = scmp.ne.s32.totalorder %s175, %s178
      %p187 = scmp.eq.s32.totalorder %s18, 1
      %p188 = por %p186, %p187
      %p189 = scmp.ne.s32.totalorder %s178, %s179
      %p190 = scmp.eq.s32.totalorder %s18, 0
      %p191 = por %p189, %p190
      %p192 = scmp.ne.s32.totalorder %s178, %s179
      %p193 = scmp.eq.s32.totalorder %s19, 1
      %p194 = por %p192, %p193
      %p196 = scmp.ne.s32.totalorder %s179, %s195
      %p197 = scmp.eq.s32.totalorder %s19, 0
      %p198 = por %p196, %p197
      %p199 = scmp.le.s32.totalorder 1, %s13
      %p200 = scmp.lt.s32.totalorder %s13, 3
      %p201 = pnand %p199, %p200
      %p202 = pneg %p201
      // Predicated region
      $region9: #{classifier_forward.1} parent=5 // pred_check
        _
      $region10: #{classifier_forward.1} parent=5 // pred_check_branch
        %204 = sbr.rel (%p201) target = $region12
      $region11: #{classifier_forward.1} parent=5 // pred_region
        %s205 = ssub.s32 %s13, 1
        // Predicated region
        $region13: #{classifier_forward.1} parent=11 // pred_check
          %p206 = pneg %p60
        $region14: #{classifier_forward.1} parent=11 // pred_check_branch
          %208 = sbr.rel (%p206) target = $region16
        $region15: #{classifier_forward.1} parent=11 // pred_region
          _
        $region16: #{classifier_forward.1} parent=11 // pred_fallthru
          _
        // Predicated region
        $region17: #{classifier_forward.1} parent=11 // pred_check
          %p209 = pneg %p81
        $region18: #{classifier_forward.1} parent=11 // pred_check_branch
          %211 = sbr.rel (%p209) target = $region20
        $region19: #{classifier_forward.1} parent=11 // pred_region
          _
        $region20: #{classifier_forward.1} parent=11 // pred_fallthru
          _
        // Predicated region
        $region21: #{classifier_forward.1} parent=11 // pred_check
          %p212 = pneg %p102
        $region22: #{classifier_forward.1} parent=11 // pred_check_branch
          %214 = sbr.rel (%p212) target = $region24
        $region23: #{classifier_forward.1} parent=11 // pred_region
          _
        $region24: #{classifier_forward.1} parent=11 // pred_fallthru
          _
        // Predicated region
        $region25: #{classifier_forward.1} parent=11 // pred_check
          %p215 = pneg %p123
        $region26: #{classifier_forward.1} parent=11 // pred_check_branch
          %217 = sbr.rel (%p215) target = $region28
        $region27: #{classifier_forward.1} parent=11 // pred_region
          _
        $region28: #{classifier_forward.1} parent=11 // pred_fallthru
          _
        // Predicated region
        $region29: #{classifier_forward.1} parent=11 // pred_check
          %p218 = pneg %p144
        $region30: #{classifier_forward.1} parent=11 // pred_check_branch
          %220 = sbr.rel (%p218) target = $region32
        $region31: #{classifier_forward.1} parent=11 // pred_region
          _
        $region32: #{classifier_forward.1} parent=11 // pred_fallthru
          _
        // Predicated region
        $region33: #{classifier_forward.1} parent=11 // pred_check
          %p221 = pneg %p165
        $region34: #{classifier_forward.1} parent=11 // pred_check_branch
          %223 = sbr.rel (%p221) target = $region36
        $region35: #{classifier_forward.1} parent=11 // pred_region
          _
        $region36: #{classifier_forward.1} parent=11 // pred_fallthru
          _
      $region12: #{classifier_forward.1} parent=5 // pred_fallthru
        _
      %p224 = scmp.lt.s32.totalorder %s13, 2
      // Predicated region
      $region37: #{classifier_forward.1} parent=5 // pred_check
        %p225 = pneg %p224
      $region38: #{classifier_forward.1} parent=5 // pred_check_branch
        %227 = sbr.rel (%p225) target = $region40
      $region39: #{classifier_forward.1} parent=5 // pred_region
        // Predicated region
        $region41: #{classifier_forward.1} parent=39 // pred_check
          %p228 = pneg %p33
        $region42: #{classifier_forward.1} parent=39 // pred_check_branch
          %230 = sbr.rel (%p228) target = $region44
        $region43: #{classifier_forward.1} parent=39 // pred_region
          %s231 = smul.u32 20, %s13
          %s232 = ssub.s32 38, %s231
          %p233 = scmp.lt.s32.totalorder %s232, 20
          %s234 = scalar_select %p233, %s232, 20
          %s235 = smul.u32 128, %s234
          %p236 = scmp.lt.s32.totalorder %s231, 37
          %s237 = scalar_select %p236, %s231, 37
          %s238 = smul.addr %s237, 8
          %s239 = scalar_lea.vmem %s0, %s238
          %s240 = smul.u32 20, %s13
          %s241 = ssub.s32 38, %s240
          %p242 = scmp.lt.s32.totalorder %s241, 20
          %s243 = scalar_select %p242, %s241, 20
          %s244 = smul.u32 128, %s243
        $region44: #{classifier_forward.1} parent=39 // pred_fallthru
          _
      $region40: #{classifier_forward.1} parent=5 // pred_fallthru
        _
      %p245 = scmp.le.s32.totalorder 1, %s13
      %p246 = scmp.lt.s32.totalorder %s13, 3
      %p247 = pnand %p245, %p246
      %p248 = pneg %p247
      // Predicated region
      $region45: #{classifier_forward.1} parent=5 // pred_check
        _
      $region46: #{classifier_forward.1} parent=5 // pred_check_branch
        %250 = sbr.rel (%p247) target = $region48
      $region47: #{classifier_forward.1} parent=5 // pred_region
        %s251 = ssub.s32 %s13, 1
        %s252 = smul.u32 20, %s18
        %s253 = ssub.s32 38, %s252
        %p254 = scmp.lt.s32.totalorder %s253, 20
        %s255 = scalar_select %p254, %s253, 20
        %s256 = smul.u32 128, %s255
        %p257 = scmp.lt.s32.totalorder %s252, 37
        %s258 = scalar_select %p257, %s252, 37
        %s259 = smul.addr %s258, 8
        %s260 = scalar_lea.vmem %s0, %s259
        %p261 = pneg %p39
        %p262 = pneg %p36
        %p263 = pneg %p60
        %p264 = pneg %p57
        %p265 = pneg %p81
        %p266 = pneg %p78
        %p267 = pneg %p102
        %p268 = pneg %p99
        %p269 = pneg %p123
        %p270 = pneg %p120
        %p271 = pneg %p144
        %p272 = pneg %p141
        %p273 = pneg %p165
        %p274 = pneg %p162
        %p275 = pneg %p191
        %p276 = pneg %p188
        %s277 = sand.u32 %s178, 1
        %s278 = sand.u32 %s178, 1
        %s279 = smul.addr %s278, 160
        %s280 = scalar_lea.vmem [#allocation2], %s279
        %s281 = smul.u32 20, %s18
        %s282 = ssub.s32 38, %s281
        %p283 = scmp.lt.s32.totalorder %s282, 20
        %s284 = scalar_select %p283, %s282, 20
        %s285 = smul.u32 128, %s284
        %p286 = scmp.lt.s32.totalorder %s281, 37
        %s287 = scalar_select %p286, %s281, 37
        %s288 = smul.addr %s287, 8
        %s289 = scalar_lea.vmem %s0, %s288
        %s290 = smul.u32 20, %s18
        %s291 = ssub.s32 38, %s290
        %p292 = scmp.lt.s32.totalorder %s291, 20
        %s293 = scalar_select %p292, %s291, 20
        %s294 = smul.u32 128, %s293
        %s295 = smul.u32 20, %s18
        %s296 = ssub.s32 38, %s295
        %p297 = scmp.lt.s32.totalorder %s296, 20
        %s298 = scalar_select %p297, %s296, 20
        %s299 = smul.u32 128, %s298
        %v301 = vld [vmem:[%s289] sm:$0xff]
        %v302 = vld [vmem:[%s289 + $0x8] sm:$0xff]
        %v303 = vld [vmem:[%s289 + $0x10] sm:$0xff]
        %v304 = vld [vmem:[%s289 + $0x18] sm:$0xff]
        %v305 = vld [vmem:[%s289 + $0x20] sm:$0xff]
        %v306 = vld [vmem:[%s289 + $0x28] sm:$0xff]
        %v307 = vld [vmem:[%s289 + $0x30] sm:$0xff]
        %v308 = vld [vmem:[%s289 + $0x38] sm:$0xff]
        %v309 = vld [vmem:[%s289 + $0x40] sm:$0xff]
        %v310 = vld [vmem:[%s289 + $0x48] sm:$0xff]
        %v311 = vld [vmem:[%s289 + $0x50] sm:$0xff]
        %v312 = vld [vmem:[%s289 + $0x58] sm:$0xff]
        %v313 = vld [vmem:[%s289 + $0x60] sm:$0xff]
        %v314 = vld [vmem:[%s289 + $0x68] sm:$0xff]
        %v315 = vld [vmem:[%s289 + $0x70] sm:$0xff]
        %v316 = vld [vmem:[%s289 + $0x78] sm:$0xff]
        %v317 = vld [vmem:[%s289 + $0x80] sm:$0xff]
        %v318 = vld [vmem:[%s289 + $0x88] sm:$0xff]
        %v319 = vld [vmem:[%s289 + $0x90] sm:$0xff]
        %v320 = vld [vmem:[%s289 + $0x98] sm:$0xff]
        %v321 = vpack.c.bf16 %v302, %v301
        %v322 = vpack.c.bf16 %v304, %v303
        %v323 = vpack.c.bf16 %v306, %v305
        %v324 = vpack.c.bf16 %v308, %v307
        %v325 = vpack.c.bf16 %v310, %v309
        %v326 = vpack.c.bf16 %v312, %v311
        %v327 = vpack.c.bf16 %v314, %v313
        %v328 = vpack.c.bf16 %v316, %v315
        %v329 = vpack.c.bf16 %v318, %v317
        %v330 = vpack.c.bf16 %v320, %v319
        %v331 = vld [vmem:[%s1] sm:$0xf]
        %v332 = vld [vmem:[%s1 + $0x4] sm:$0xf]
        %v333 = vld [vmem:[%s1 + $0x8] sm:$0xf]
        %v334 = vld [vmem:[%s1 + $0xc] sm:$0xf]
        %v335 = vld [vmem:[%s2] sm:$0x1]
        %v337 = vlaneseq
        %v338 = vshrl.u32 %v337, 7
        %v339 = vsub.s32 0, %v338
        %v340 = vrot.slane %v335, %v339
        %v346 = vunpack.c.l.b16 %v331
        %v347 = vunpack.c.l.b16 %v332
        %v348 = vunpack.c.l.b16 %v333
        %v349 = vunpack.c.l.b16 %v334
        %v350 = vpack.c.b16 %v347, %v346
        %v351 = vpack.c.b16 %v349, %v348
        %vm354 = vcmask 261120
        %v356 = vsel %vm354, %v321, 0
        %v359 = vsel %vm354, %v322, 0
        %v362 = vsel %vm354, %v323, 0
        %v365 = vsel %vm354, %v324, 0
        %v368 = vsel %vm354, %v325, 0
        %v371 = vsel %vm354, %v326, 0
        %v374 = vsel %vm354, %v327, 0
        %v377 = vsel %vm354, %v328, 0
        %v380 = vsel %vm354, %v329, 0
        %v383 = vsel %vm354, %v330, 0
        %385 = vmatprep.subr.bf16.mxu0 0
        %386 = vmatpush1.bf16.msra.mxu0 %v350
        %387 = vmatprep.subr.bf16.mxu0 0
        %388 = vmatpush1.bf16.msra.mxu0 %v351
        %389 = vmatprep.subr.bf16.mxu0 0
        %390 = vmatpush1.bf16.msra.mxu0 0
        %391 = vmatprep.subr.bf16.mxu0 0
        %392 = vmatpush1.bf16.msra.mxu0 0
        %393 = vmatprep.subr.bf16.mxu0 0
        %394 = vmatpush1.bf16.msra.mxu0 0
        %395 = vmatprep.subr.bf16.mxu0 0
        %396 = vmatpush1.bf16.msra.mxu0 0
        %397 = vmatprep.subr.bf16.mxu0 0
        %398 = vmatpush1.bf16.msra.mxu0 0
        %399 = vmatprep.subr.bf16.mxu0 0
        %400 = vmatpush1.bf16.msra.mxu0 0
        %401 = vmatprep.subr.bf16.mxu0 0
        %402 = vmatpush1.bf16.msra.mxu0 0
        %403 = vmatprep.subr.bf16.mxu0 0
        %404 = vmatpush1.bf16.msra.mxu0 0
        %405 = vmatprep.subr.bf16.mxu0 0
        %406 = vmatpush1.bf16.msra.mxu0 0
        %407 = vmatprep.subr.bf16.mxu0 0
        %408 = vmatpush1.bf16.msra.mxu0 0
        %409 = vmatprep.subr.bf16.mxu0 0
        %410 = vmatpush1.bf16.msra.mxu0 0
        %411 = vmatprep.subr.bf16.mxu0 0
        %412 = vmatpush1.bf16.msra.mxu0 0
        %413 = vmatprep.subr.bf16.mxu0 0
        %414 = vmatpush1.bf16.msra.mxu0 0
        %415 = vmatprep.subr.bf16.mxu0 0
        %416 = vmatpush1.bf16.msra.mxu0 0
        %417 = vmatprep.mubr.bf16.mxu0 0
        %418 = vmatmul.mubr.bf16.gmra.mrb[0].mxu0 %v356
        %v419 = vpop.f32.mrb[0].mxu0
        %v420 = vadd.f32 %v340, %v419
        %v421 = vpop.f32.mrb[0].mxu0
        %v422 = vpop.f32.mrb[0].mxu0
        %v423 = vadd.f32 %v340, %v422
        %v424 = vpop.f32.mrb[0].mxu0
        %425 = vmatprep.mubr.bf16.mxu0 0
        %426 = vmatmul.mubr.bf16.gmra.mrb[0].mxu0 %v359
        %v427 = vpop.f32.mrb[0].mxu0
        %v428 = vadd.f32 %v340, %v427
        %v429 = vpop.f32.mrb[0].mxu0
        %v430 = vpop.f32.mrb[0].mxu0
        %v431 = vadd.f32 %v340, %v430
        %v432 = vpop.f32.mrb[0].mxu0
        %433 = vmatprep.mubr.bf16.mxu0 0
        %434 = vmatmul.mubr.bf16.gmra.mrb[0].mxu0 %v362
        %v435 = vpop.f32.mrb[0].mxu0
        %v436 = vadd.f32 %v340, %v435
        %v437 = vpop.f32.mrb[0].mxu0
        %v438 = vpop.f32.mrb[0].mxu0
        %v439 = vadd.f32 %v340, %v438
        %v440 = vpop.f32.mrb[0].mxu0
        %441 = vmatprep.mubr.bf16.mxu0 0
        %442 = vmatmul.mubr.bf16.gmra.mrb[0].mxu0 %v365
        %v443 = vpop.f32.mrb[0].mxu0
        %v444 = vadd.f32 %v340, %v443
        %v445 = vpop.f32.mrb[0].mxu0
        %v446 = vpop.f32.mrb[0].mxu0
        %v447 = vadd.f32 %v340, %v446
        %v448 = vpop.f32.mrb[0].mxu0
        %449 = vmatprep.mubr.bf16.mxu0 0
        %450 = vmatmul.mubr.bf16.gmra.mrb[0].mxu0 %v368
        %v451 = vpop.f32.mrb[0].mxu0
        %v452 = vadd.f32 %v340, %v451
        %v453 = vpop.f32.mrb[0].mxu0
        %v454 = vpop.f32.mrb[0].mxu0
        %v455 = vadd.f32 %v340, %v454
        %v456 = vpop.f32.mrb[0].mxu0
        %457 = vmatprep.mubr.bf16.mxu0 0
        %458 = vmatmul.mubr.bf16.gmra.mrb[0].mxu0 %v371
        %v459 = vpop.f32.mrb[0].mxu0
        %v460 = vadd.f32 %v340, %v459
        %v461 = vpop.f32.mrb[0].mxu0
        %v462 = vpop.f32.mrb[0].mxu0
        %v463 = vadd.f32 %v340, %v462
        %v464 = vpop.f32.mrb[0].mxu0
        %465 = vmatprep.mubr.bf16.mxu0 0
        %466 = vmatmul.mubr.bf16.gmra.mrb[0].mxu0 %v374
        %v467 = vpop.f32.mrb[0].mxu0
        %v468 = vadd.f32 %v340, %v467
        %v469 = vpop.f32.mrb[0].mxu0
        %v470 = vpop.f32.mrb[0].mxu0
        %v471 = vadd.f32 %v340, %v470
        %v472 = vpop.f32.mrb[0].mxu0
        %473 = vmatprep.mubr.bf16.mxu0 0
        %474 = vmatmul.mubr.bf16.gmra.mrb[0].mxu0 %v377
        %v475 = vpop.f32.mrb[0].mxu0
        %v476 = vadd.f32 %v340, %v475
        %v477 = vpop.f32.mrb[0].mxu0
        %v478 = vpop.f32.mrb[0].mxu0
        %v479 = vadd.f32 %v340, %v478
        %v480 = vpop.f32.mrb[0].mxu0
        %481 = vmatprep.mubr.bf16.mxu0 0
        %482 = vmatmul.mubr.bf16.gmra.mrb[0].mxu0 %v380
        %v483 = vpop.f32.mrb[0].mxu0
        %v484 = vadd.f32 %v340, %v483
        %v485 = vpop.f32.mrb[0].mxu0
        %v486 = vpop.f32.mrb[0].mxu0
        %v487 = vadd.f32 %v340, %v486
        %v488 = vpop.f32.mrb[0].mxu0
        %489 = vmatprep.mubr.bf16.mxu0 0
        %490 = vmatmul.mubr.bf16.gmra.mrb[0].mxu0 %v383
        %v491 = vpop.f32.mrb[0].mxu0
        %v492 = vadd.f32 %v340, %v491
        %v493 = vpop.f32.mrb[0].mxu0
        %v494 = vpop.f32.mrb[0].mxu0
        %v495 = vadd.f32 %v340, %v494
        %v496 = vpop.f32.mrb[0].mxu0
        %497 = vdwg.mxu0
        %v498 = vmax.f32 %v420, 0.0
        %v499 = vmax.f32 %v423, 0.0
        %v500 = vmax.f32 %v428, 0.0
        %v501 = vmax.f32 %v431, 0.0
        %v502 = vmax.f32 %v436, 0.0
        %v503 = vmax.f32 %v439, 0.0
        %v504 = vmax.f32 %v444, 0.0
        %v505 = vmax.f32 %v447, 0.0
        %v506 = vmax.f32 %v452, 0.0
        %v507 = vmax.f32 %v455, 0.0
        %v508 = vmax.f32 %v460, 0.0
        %v509 = vmax.f32 %v463, 0.0
        %v510 = vmax.f32 %v468, 0.0
        %v511 = vmax.f32 %v471, 0.0
        %v512 = vmax.f32 %v476, 0.0
        %v513 = vmax.f32 %v479, 0.0
        %v514 = vmax.f32 %v484, 0.0
        %v515 = vmax.f32 %v487, 0.0
        %v516 = vmax.f32 %v492, 0.0
        %v517 = vmax.f32 %v495, 0.0
        %v518 = vpack.c.bf16 %v499, %v498
        %v519 = vpack.c.bf16 %v501, %v500
        %v520 = vpack.c.bf16 %v503, %v502
        %v521 = vpack.c.bf16 %v505, %v504
        %v522 = vpack.c.bf16 %v507, %v506
        %v523 = vpack.c.bf16 %v509, %v508
        %v524 = vpack.c.bf16 %v511, %v510
        %v525 = vpack.c.bf16 %v513, %v512
        %v526 = vpack.c.bf16 %v515, %v514
        %v527 = vpack.c.bf16 %v517, %v516
        %v528 = vld [vmem:[%s3] sm:$0xf]
        %v529 = vld [vmem:[%s3 + $0x4] sm:$0xf]
        %v530 = vld [vmem:[%s3 + $0x8] sm:$0xf]
        %v531 = vld [vmem:[%s3 + $0xc] sm:$0xf]
        %v532 = vld [vmem:[%s3 + $0x10] sm:$0xf]
        %v533 = vld [vmem:[%s3 + $0x14] sm:$0xf]
        %v534 = vld [vmem:[%s3 + $0x18] sm:$0xf]
        %v535 = vld [vmem:[%s3 + $0x1c] sm:$0xf]
        %v536 = vld [vmem:[%s3 + $0x20] sm:$0xf]
        %v537 = vld [vmem:[%s3 + $0x24] sm:$0xf]
        %v538 = vld [vmem:[%s3 + $0x28] sm:$0xf]
        %v539 = vld [vmem:[%s3 + $0x2c] sm:$0xf]
        %v540 = vld [vmem:[%s3 + $0x30] sm:$0xf]
        %v541 = vld [vmem:[%s3 + $0x34] sm:$0xf]
        %v542 = vld [vmem:[%s3 + $0x38] sm:$0xf]
        %v543 = vld [vmem:[%s3 + $0x3c] sm:$0xf]
        %v544 = vld [vmem:[%s4] sm:$0x1]
        %v546 = vlaneseq
        %v547 = vshrl.u32 %v546, 7
        %v548 = vsub.s32 0, %v547
        %v549 = vrot.slane %v544, %v548
        %v567 = vunpack.c.l.b16 %v528
        %v568 = vunpack.c.l.b16 %v529
        %v569 = vunpack.c.l.b16 %v530
        %v570 = vunpack.c.l.b16 %v531
        %v571 = vunpack.c.l.b16 %v532
        %v572 = vunpack.c.l.b16 %v533
        %v573 = vunpack.c.l.b16 %v534
        %v574 = vunpack.c.l.b16 %v535
        %v575 = vunpack.c.l.b16 %v536
        %v576 = vunpack.c.l.b16 %v537
        %v577 = vunpack.c.l.b16 %v538
        %v578 = vunpack.c.l.b16 %v539
        %v579 = vunpack.c.l.b16 %v540
        %v580 = vunpack.c.l.b16 %v541
        %v581 = vunpack.c.l.b16 %v542
        %v582 = vunpack.c.l.b16 %v543
        %v583 = vpack.c.b16 %v568, %v567
        %v584 = vpack.c.b16 %v570, %v569
        %v585 = vpack.c.b16 %v572, %v571
        %v586 = vpack.c.b16 %v574, %v573
        %v587 = vpack.c.b16 %v576, %v575
        %v588 = vpack.c.b16 %v578, %v577
        %v589 = vpack.c.b16 %v580, %v579
        %v590 = vpack.c.b16 %v582, %v581
        %599 = vmatprep.subr.bf16.mxu0 0
        %600 = vmatpush1.bf16.msra.mxu0 %v583
        %601 = vmatprep.subr.bf16.mxu0 0
        %602 = vmatpush1.bf16.msra.mxu0 %v584
        %603 = vmatprep.subr.bf16.mxu0 0
        %604 = vmatpush1.bf16.msra.mxu0 %v585
        %605 = vmatprep.subr.bf16.mxu0 0
        %606 = vmatpush1.bf16.msra.mxu0 %v586
        %607 = vmatprep.subr.bf16.mxu0 0
        %608 = vmatpush1.bf16.msra.mxu0 %v587
        %609 = vmatprep.subr.bf16.mxu0 0
        %610 = vmatpush1.bf16.msra.mxu0 %v588
        %611 = vmatprep.subr.bf16.mxu0 0
        %612 = vmatpush1.bf16.msra.mxu0 %v589
        %613 = vmatprep.subr.bf16.mxu0 0
        %614 = vmatpush1.bf16.msra.mxu0 %v590
        %615 = vmatprep.subr.bf16.mxu0 0
        %616 = vmatpush1.bf16.msra.mxu0 0
        %617 = vmatprep.subr.bf16.mxu0 0
        %618 = vmatpush1.bf16.msra.mxu0 0
        %619 = vmatprep.subr.bf16.mxu0 0
        %620 = vmatpush1.bf16.msra.mxu0 0
        %621 = vmatprep.subr.bf16.mxu0 0
        %622 = vmatpush1.bf16.msra.mxu0 0
        %623 = vmatprep.subr.bf16.mxu0 0
        %624 = vmatpush1.bf16.msra.mxu0 0
        %625 = vmatprep.subr.bf16.mxu0 0
        %626 = vmatpush1.bf16.msra.mxu0 0
        %627 = vmatprep.subr.bf16.mxu0 0
        %628 = vmatpush1.bf16.msra.mxu0 0
        %629 = vmatprep.subr.bf16.mxu0 0
        %630 = vmatpush1.bf16.msra.mxu0 0
        %631 = vmatprep.mubr.bf16.mxu0 0
        %632 = vmatmul.mubr.bf16.gmra.mrb[0].mxu0 %v518
        %v633 = vpop.f32.mrb[0].mxu0
        %v634 = vadd.f32 %v549, %v633
        %v635 = vpop.f32.mrb[0].mxu0
        %v636 = vpop.f32.mrb[0].mxu0
        %v637 = vadd.f32 %v549, %v636
        %v638 = vpop.f32.mrb[0].mxu0
        %639 = vmatprep.mubr.bf16.mxu0 0
        %640 = vmatmul.mubr.bf16.gmra.mrb[0].mxu0 %v519
        %v641 = vpop.f32.mrb[0].mxu0
        %v642 = vadd.f32 %v549, %v641
        %v643 = vpop.f32.mrb[0].mxu0
        %v644 = vpop.f32.mrb[0].mxu0
        %v645 = vadd.f32 %v549, %v644
        %v646 = vpop.f32.mrb[0].mxu0
        %647 = vmatprep.mubr.bf16.mxu0 0
        %648 = vmatmul.mubr.bf16.gmra.mrb[0].mxu0 %v520
        %v649 = vpop.f32.mrb[0].mxu0
        %v650 = vadd.f32 %v549, %v649
        %v651 = vpop.f32.mrb[0].mxu0
        %v652 = vpop.f32.mrb[0].mxu0
        %v653 = vadd.f32 %v549, %v652
        %v654 = vpop.f32.mrb[0].mxu0
        %655 = vmatprep.mubr.bf16.mxu0 0
        %656 = vmatmul.mubr.bf16.gmra.mrb[0].mxu0 %v521
        %v657 = vpop.f32.mrb[0].mxu0
        %v658 = vadd.f32 %v549, %v657
        %v659 = vpop.f32.mrb[0].mxu0
        %v660 = vpop.f32.mrb[0].mxu0
        %v661 = vadd.f32 %v549, %v660
        %v662 = vpop.f32.mrb[0].mxu0
        %663 = vmatprep.mubr.bf16.mxu0 0
        %664 = vmatmul.mubr.bf16.gmra.mrb[0].mxu0 %v522
        %v665 = vpop.f32.mrb[0].mxu0
        %v666 = vadd.f32 %v549, %v665
        %v667 = vpop.f32.mrb[0].mxu0
        %v668 = vpop.f32.mrb[0].mxu0
        %v669 = vadd.f32 %v549, %v668
        %v670 = vpop.f32.mrb[0].mxu0
        %671 = vmatprep.mubr.bf16.mxu0 0
        %672 = vmatmul.mubr.bf16.gmra.mrb[0].mxu0 %v523
        %v673 = vpop.f32.mrb[0].mxu0
        %v674 = vadd.f32 %v549, %v673
        %v675 = vpop.f32.mrb[0].mxu0
        %v676 = vpop.f32.mrb[0].mxu0
        %v677 = vadd.f32 %v549, %v676
        %v678 = vpop.f32.mrb[0].mxu0
        %679 = vmatprep.mubr.bf16.mxu0 0
        %680 = vmatmul.mubr.bf16.gmra.mrb[0].mxu0 %v524
        %v681 = vpop.f32.mrb[0].mxu0
        %v682 = vadd.f32 %v549, %v681
        %v683 = vpop.f32.mrb[0].mxu0
        %v684 = vpop.f32.mrb[0].mxu0
        %v685 = vadd.f32 %v549, %v684
        %v686 = vpop.f32.mrb[0].mxu0
        %687 = vmatprep.mubr.bf16.mxu0 0
        %688 = vmatmul.mubr.bf16.gmra.mrb[0].mxu0 %v525
        %v689 = vpop.f32.mrb[0].mxu0
        %v690 = vadd.f32 %v549, %v689
        %v691 = vpop.f32.mrb[0].mxu0
        %v692 = vpop.f32.mrb[0].mxu0
        %v693 = vadd.f32 %v549, %v692
        %v694 = vpop.f32.mrb[0].mxu0
        %695 = vmatprep.mubr.bf16.mxu0 0
        %696 = vmatmul.mubr.bf16.gmra.mrb[0].mxu0 %v526
        %v697 = vpop.f32.mrb[0].mxu0
        %v698 = vadd.f32 %v549, %v697
        %v699 = vpop.f32.mrb[0].mxu0
        %v700 = vpop.f32.mrb[0].mxu0
        %v701 = vadd.f32 %v549, %v700
        %v702 = vpop.f32.mrb[0].mxu0
        %703 = vmatprep.mubr.bf16.mxu0 0
        %704 = vmatmul.mubr.bf16.gmra.mrb[0].mxu0 %v527
        %v705 = vpop.f32.mrb[0].mxu0
        %v706 = vadd.f32 %v549, %v705
        %v707 = vpop.f32.mrb[0].mxu0
        %v708 = vpop.f32.mrb[0].mxu0
        %v709 = vadd.f32 %v549, %v708
        %v710 = vpop.f32.mrb[0].mxu0
        %711 = vdwg.mxu0
        %v712 = vmax.f32 %v634, 0.0
        %v713 = vmax.f32 %v637, 0.0
        %v714 = vmax.f32 %v642, 0.0
        %v715 = vmax.f32 %v645, 0.0
        %v716 = vmax.f32 %v650, 0.0
        %v717 = vmax.f32 %v653, 0.0
        %v718 = vmax.f32 %v658, 0.0
        %v719 = vmax.f32 %v661, 0.0
        %v720 = vmax.f32 %v666, 0.0
        %v721 = vmax.f32 %v669, 0.0
        %v722 = vmax.f32 %v674, 0.0
        %v723 = vmax.f32 %v677, 0.0
        %v724 = vmax.f32 %v682, 0.0
        %v725 = vmax.f32 %v685, 0.0
        %v726 = vmax.f32 %v690, 0.0
        %v727 = vmax.f32 %v693, 0.0
        %v728 = vmax.f32 %v698, 0.0
        %v729 = vmax.f32 %v701, 0.0
        %v730 = vmax.f32 %v706, 0.0
        %v731 = vmax.f32 %v709, 0.0
        %v732 = vpack.c.bf16 %v713, %v712
        %v733 = vpack.c.bf16 %v715, %v714
        %v734 = vpack.c.bf16 %v717, %v716
        %v735 = vpack.c.bf16 %v719, %v718
        %v736 = vpack.c.bf16 %v721, %v720
        %v737 = vpack.c.bf16 %v723, %v722
        %v738 = vpack.c.bf16 %v725, %v724
        %v739 = vpack.c.bf16 %v727, %v726
        %v740 = vpack.c.bf16 %v729, %v728
        %v741 = vpack.c.bf16 %v731, %v730
        %v742 = vld [vmem:[%s5] sm:$0xf]
        %v743 = vld [vmem:[%s5 + $0x4] sm:$0xf]
        %v744 = vld [vmem:[%s5 + $0x8] sm:$0xf]
        %v745 = vld [vmem:[%s5 + $0xc] sm:$0xf]
        %v746 = vld [vmem:[%s5 + $0x10] sm:$0xf]
        %v747 = vld [vmem:[%s5 + $0x14] sm:$0xf]
        %v748 = vld [vmem:[%s5 + $0x18] sm:$0xf]
        %v749 = vld [vmem:[%s5 + $0x1c] sm:$0xf]
        %v750 = vld [vmem:[%s5 + $0x20] sm:$0xf]
        %v751 = vld [vmem:[%s5 + $0x24] sm:$0xf]
        %v752 = vld [vmem:[%s5 + $0x28] sm:$0xf]
        %v753 = vld [vmem:[%s5 + $0x2c] sm:$0xf]
        %v754 = vld [vmem:[%s5 + $0x30] sm:$0xf]
        %v755 = vld [vmem:[%s5 + $0x34] sm:$0xf]
        %v756 = vld [vmem:[%s5 + $0x38] sm:$0xf]
        %v757 = vld [vmem:[%s5 + $0x3c] sm:$0xf]
        %v758 = vld [vmem:[%s6] sm:$0x1]
        %v760 = vlaneseq
        %v761 = vshrl.u32 %v760, 7
        %v762 = vsub.s32 0, %v761
        %v763 = vrot.slane %v758, %v762
        %v781 = vunpack.c.l.b16 %v742
        %v782 = vunpack.c.l.b16 %v743
        %v783 = vunpack.c.l.b16 %v744
        %v784 = vunpack.c.l.b16 %v745
        %v785 = vunpack.c.l.b16 %v746
        %v786 = vunpack.c.l.b16 %v747
        %v787 = vunpack.c.l.b16 %v748
        %v788 = vunpack.c.l.b16 %v749
        %v789 = vunpack.c.l.b16 %v750
        %v790 = vunpack.c.l.b16 %v751
        %v791 = vunpack.c.l.b16 %v752
        %v792 = vunpack.c.l.b16 %v753
        %v793 = vunpack.c.l.b16 %v754
        %v794 = vunpack.c.l.b16 %v755
        %v795 = vunpack.c.l.b16 %v756
        %v796 = vunpack.c.l.b16 %v757
        %v797 = vpack.c.b16 %v782, %v781
        %v798 = vpack.c.b16 %v784, %v783
        %v799 = vpack.c.b16 %v786, %v785
        %v800 = vpack.c.b16 %v788, %v787
        %v801 = vpack.c.b16 %v790, %v789
        %v802 = vpack.c.b16 %v792, %v791
        %v803 = vpack.c.b16 %v794, %v793
        %v804 = vpack.c.b16 %v796, %v795
        %813 = vmatprep.subr.bf16.mxu0 0
        %814 = vmatpush1.bf16.msra.mxu0 %v797
        %815 = vmatprep.subr.bf16.mxu0 0
        %816 = vmatpush1.bf16.msra.mxu0 %v798
        %817 = vmatprep.subr.bf16.mxu0 0
        %818 = vmatpush1.bf16.msra.mxu0 %v799
        %819 = vmatprep.subr.bf16.mxu0 0
        %820 = vmatpush1.bf16.msra.mxu0 %v800
        %821 = vmatprep.subr.bf16.mxu0 0
        %822 = vmatpush1.bf16.msra.mxu0 %v801
        %823 = vmatprep.subr.bf16.mxu0 0
        %824 = vmatpush1.bf16.msra.mxu0 %v802
        %825 = vmatprep.subr.bf16.mxu0 0
        %826 = vmatpush1.bf16.msra.mxu0 %v803
        %827 = vmatprep.subr.bf16.mxu0 0
        %828 = vmatpush1.bf16.msra.mxu0 %v804
        %829 = vmatprep.subr.bf16.mxu0 0
        %830 = vmatpush1.bf16.msra.mxu0 0
        %831 = vmatprep.subr.bf16.mxu0 0
        %832 = vmatpush1.bf16.msra.mxu0 0
        %833 = vmatprep.subr.bf16.mxu0 0
        %834 = vmatpush1.bf16.msra.mxu0 0
        %835 = vmatprep.subr.bf16.mxu0 0
        %836 = vmatpush1.bf16.msra.mxu0 0
        %837 = vmatprep.subr.bf16.mxu0 0
        %838 = vmatpush1.bf16.msra.mxu0 0
        %839 = vmatprep.subr.bf16.mxu0 0
        %840 = vmatpush1.bf16.msra.mxu0 0
        %841 = vmatprep.subr.bf16.mxu0 0
        %842 = vmatpush1.bf16.msra.mxu0 0
        %843 = vmatprep.subr.bf16.mxu0 0
        %844 = vmatpush1.bf16.msra.mxu0 0
        %845 = vmatprep.mubr.bf16.mxu0 0
        %846 = vmatmul.mubr.bf16.gmra.mrb[0].mxu0 %v732
        %v847 = vpop.f32.mrb[0].mxu0
        %v848 = vadd.f32 %v763, %v847
        %v849 = vpop.f32.mrb[0].mxu0
        %v850 = vpop.f32.mrb[0].mxu0
        %v851 = vadd.f32 %v763, %v850
        %v852 = vpop.f32.mrb[0].mxu0
        %853 = vmatprep.mubr.bf16.mxu0 0
        %854 = vmatmul.mubr.bf16.gmra.mrb[0].mxu0 %v733
        %v855 = vpop.f32.mrb[0].mxu0
        %v856 = vadd.f32 %v763, %v855
        %v857 = vpop.f32.mrb[0].mxu0
        %v858 = vpop.f32.mrb[0].mxu0
        %v859 = vadd.f32 %v763, %v858
        %v860 = vpop.f32.mrb[0].mxu0
        %861 = vmatprep.mubr.bf16.mxu0 0
        %862 = vmatmul.mubr.bf16.gmra.mrb[0].mxu0 %v734
        %v863 = vpop.f32.mrb[0].mxu0
        %v864 = vadd.f32 %v763, %v863
        %v865 = vpop.f32.mrb[0].mxu0
        %v866 = vpop.f32.mrb[0].mxu0
        %v867 = vadd.f32 %v763, %v866
        %v868 = vpop.f32.mrb[0].mxu0
        %869 = vmatprep.mubr.bf16.mxu0 0
        %870 = vmatmul.mubr.bf16.gmra.mrb[0].mxu0 %v735
        %v871 = vpop.f32.mrb[0].mxu0
        %v872 = vadd.f32 %v763, %v871
        %v873 = vpop.f32.mrb[0].mxu0
        %v874 = vpop.f32.mrb[0].mxu0
        %v875 = vadd.f32 %v763, %v874
        %v876 = vpop.f32.mrb[0].mxu0
        %877 = vmatprep.mubr.bf16.mxu0 0
        %878 = vmatmul.mubr.bf16.gmra.mrb[0].mxu0 %v736
        %v879 = vpop.f32.mrb[0].mxu0
        %v880 = vadd.f32 %v763, %v879
        %v881 = vpop.f32.mrb[0].mxu0
        %v882 = vpop.f32.mrb[0].mxu0
        %v883 = vadd.f32 %v763, %v882
        %v884 = vpop.f32.mrb[0].mxu0
        %885 = vmatprep.mubr.bf16.mxu0 0
        %886 = vmatmul.mubr.bf16.gmra.mrb[0].mxu0 %v737
        %v887 = vpop.f32.mrb[0].mxu0
        %v888 = vadd.f32 %v763, %v887
        %v889 = vpop.f32.mrb[0].mxu0
        %v890 = vpop.f32.mrb[0].mxu0
        %v891 = vadd.f32 %v763, %v890
        %v892 = vpop.f32.mrb[0].mxu0
        %893 = vmatprep.mubr.bf16.mxu0 0
        %894 = vmatmul.mubr.bf16.gmra.mrb[0].mxu0 %v738
        %v895 = vpop.f32.mrb[0].mxu0
        %v896 = vadd.f32 %v763, %v895
        %v897 = vpop.f32.mrb[0].mxu0
        %v898 = vpop.f32.mrb[0].mxu0
        %v899 = vadd.f32 %v763, %v898
        %v900 = vpop.f32.mrb[0].mxu0
        %901 = vmatprep.mubr.bf16.mxu0 0
        %902 = vmatmul.mubr.bf16.gmra.mrb[0].mxu0 %v739
        %v903 = vpop.f32.mrb[0].mxu0
        %v904 = vadd.f32 %v763, %v903
        %v905 = vpop.f32.mrb[0].mxu0
        %v906 = vpop.f32.mrb[0].mxu0
        %v907 = vadd.f32 %v763, %v906
        %v908 = vpop.f32.mrb[0].mxu0
        %909 = vmatprep.mubr.bf16.mxu0 0
        %910 = vmatmul.mubr.bf16.gmra.mrb[0].mxu0 %v740
        %v911 = vpop.f32.mrb[0].mxu0
        %v912 = vadd.f32 %v763, %v911
        %v913 = vpop.f32.mrb[0].mxu0
        %v914 = vpop.f32.mrb[0].mxu0
        %v915 = vadd.f32 %v763, %v914
        %v916 = vpop.f32.mrb[0].mxu0
        %917 = vmatprep.mubr.bf16.mxu0 0
        %918 = vmatmul.mubr.bf16.gmra.mrb[0].mxu0 %v741
        %v919 = vpop.f32.mrb[0].mxu0
        %v920 = vadd.f32 %v763, %v919
        %v921 = vpop.f32.mrb[0].mxu0
        %v922 = vpop.f32.mrb[0].mxu0
        %v923 = vadd.f32 %v763, %v922
        %v924 = vpop.f32.mrb[0].mxu0
        %925 = vdwg.mxu0
        %v926 = vmul.f32 %v848, 0.5
        %v927 = vmul.f32 %v851, 0.5
        %v928 = vmul.f32 %v856, 0.5
        %v929 = vmul.f32 %v859, 0.5
        %v930 = vmul.f32 %v864, 0.5
        %v931 = vmul.f32 %v867, 0.5
        %v932 = vmul.f32 %v872, 0.5
        %v933 = vmul.f32 %v875, 0.5
        %v934 = vmul.f32 %v880, 0.5
        %v935 = vmul.f32 %v883, 0.5
        %v936 = vmul.f32 %v888, 0.5
        %v937 = vmul.f32 %v891, 0.5
        %v938 = vmul.f32 %v896, 0.5
        %v939 = vmul.f32 %v899, 0.5
        %v940 = vmul.f32 %v904, 0.5
        %v941 = vmul.f32 %v907, 0.5
        %v942 = vmul.f32 %v912, 0.5
        %v943 = vmul.f32 %v915, 0.5
        %v944 = vmul.f32 %v920, 0.5
        %v945 = vmul.f32 %v923, 0.5
        %v946 = vtanh.pop %v926
        %v947 = vtanh.pop %v927
        %v948 = vtanh.pop %v928
        %v949 = vtanh.pop %v929
        %v950 = vtanh.pop %v930
        %v951 = vtanh.pop %v931
        %v952 = vtanh.pop %v932
        %v953 = vtanh.pop %v933
        %v954 = vtanh.pop %v934
        %v955 = vtanh.pop %v935
        %v956 = vtanh.pop %v936
        %v957 = vtanh.pop %v937
        %v958 = vtanh.pop %v938
        %v959 = vtanh.pop %v939
        %v960 = vtanh.pop %v940
        %v961 = vtanh.pop %v941
        %v962 = vtanh.pop %v942
        %v963 = vtanh.pop %v943
        %v964 = vtanh.pop %v944
        %v965 = vtanh.pop %v945
        %v966 = vmul.f32 %v946, 0.5
        %v967 = vmul.f32 %v947, 0.5
        %v968 = vmul.f32 %v948, 0.5
        %v969 = vmul.f32 %v949, 0.5
        %v970 = vmul.f32 %v950, 0.5
        %v971 = vmul.f32 %v951, 0.5
        %v972 = vmul.f32 %v952, 0.5
        %v973 = vmul.f32 %v953, 0.5
        %v974 = vmul.f32 %v954, 0.5
        %v975 = vmul.f32 %v955, 0.5
        %v976 = vmul.f32 %v956, 0.5
        %v977 = vmul.f32 %v957, 0.5
        %v978 = vmul.f32 %v958, 0.5
        %v979 = vmul.f32 %v959, 0.5
        %v980 = vmul.f32 %v960, 0.5
        %v981 = vmul.f32 %v961, 0.5
        %v982 = vmul.f32 %v962, 0.5
        %v983 = vmul.f32 %v963, 0.5
        %v984 = vmul.f32 %v964, 0.5
        %v985 = vmul.f32 %v965, 0.5
        %v986 = vadd.f32 %v966, 0.5
        %v987 = vadd.f32 %v967, 0.5
        %v988 = vadd.f32 %v968, 0.5
        %v989 = vadd.f32 %v969, 0.5
        %v990 = vadd.f32 %v970, 0.5
        %v991 = vadd.f32 %v971, 0.5
        %v992 = vadd.f32 %v972, 0.5
        %v993 = vadd.f32 %v973, 0.5
        %v994 = vadd.f32 %v974, 0.5
        %v995 = vadd.f32 %v975, 0.5
        %v996 = vadd.f32 %v976, 0.5
        %v997 = vadd.f32 %v977, 0.5
        %v998 = vadd.f32 %v978, 0.5
        %v999 = vadd.f32 %v979, 0.5
        %v1000 = vadd.f32 %v980, 0.5
        %v1001 = vadd.f32 %v981, 0.5
        %v1002 = vadd.f32 %v982, 0.5
        %v1003 = vadd.f32 %v983, 0.5
        %v1004 = vadd.f32 %v984, 0.5
        %v1005 = vadd.f32 %v985, 0.5
        %vm1006 = vcmask 64512
        %1007 = vst.msk [vmem:[%s280] sm:$0xff] %vm1006, %v986
        %1008 = vst.msk [vmem:[%s280 + $0x8] sm:$0xff] %vm1006, %v987
        %1009 = vst.msk [vmem:[%s280 + $0x10] sm:$0xff] %vm1006, %v988
        %1010 = vst.msk [vmem:[%s280 + $0x18] sm:$0xff] %vm1006, %v989
        %1011 = vst.msk [vmem:[%s280 + $0x20] sm:$0xff] %vm1006, %v990
        %1012 = vst.msk [vmem:[%s280 + $0x28] sm:$0xff] %vm1006, %v991
        %1013 = vst.msk [vmem:[%s280 + $0x30] sm:$0xff] %vm1006, %v992
        %1014 = vst.msk [vmem:[%s280 + $0x38] sm:$0xff] %vm1006, %v993
        %1015 = vst.msk [vmem:[%s280 + $0x40] sm:$0xff] %vm1006, %v994
        %1016 = vst.msk [vmem:[%s280 + $0x48] sm:$0xff] %vm1006, %v995
        %1017 = vst.msk [vmem:[%s280 + $0x50] sm:$0xff] %vm1006, %v996
        %1018 = vst.msk [vmem:[%s280 + $0x58] sm:$0xff] %vm1006, %v997
        %1019 = vst.msk [vmem:[%s280 + $0x60] sm:$0xff] %vm1006, %v998
        %1020 = vst.msk [vmem:[%s280 + $0x68] sm:$0xff] %vm1006, %v999
        %1021 = vst.msk [vmem:[%s280 + $0x70] sm:$0xff] %vm1006, %v1000
        %1022 = vst.msk [vmem:[%s280 + $0x78] sm:$0xff] %vm1006, %v1001
        %1023 = vst.msk [vmem:[%s280 + $0x80] sm:$0xff] %vm1006, %v1002
        %1024 = vst.msk [vmem:[%s280 + $0x88] sm:$0xff] %vm1006, %v1003
        %1025 = vst.msk [vmem:[%s280 + $0x90] sm:$0xff] %vm1006, %v1004
        %1026 = vst.msk [vmem:[%s280 + $0x98] sm:$0xff] %vm1006, %v1005
        %s1027 = sand.u32 %s178, 1
        %s1028 = sand.u32 %s178, 1
        %s1029 = smul.addr %s1028, 160
        %s1030 = scalar_lea.vmem [#allocation2], %s1029
        // Predicated region
        $region49: #{classifier_forward.1} parent=47 // pred_check
          %p1031 = pneg %p188
        $region50: #{classifier_forward.1} parent=47 // pred_check_branch
          %1033 = sbr.rel (%p1031) target = $region52
        $region51: #{classifier_forward.1} parent=47 // pred_region
          %s1034 = smul.u32 20, %s18
          %s1035 = ssub.s32 38, %s1034
          %p1036 = scmp.lt.s32.totalorder %s1035, 20
          %s1037 = scalar_select %p1036, %s1035, 20
          %s1038 = smul.u32 128, %s1037
          %p1039 = scmp.ne.s32.totalorder 0, %s1038
          %s1040 = smul.addr %s1034, 8
          %s1041 = scalar_lea.vmem %s7, %s1040
          // Predicated region
          $region53: #{classifier_forward.1} parent=51 // pred_check
            %p1042 = pneg %p1039
          $region54: #{classifier_forward.1} parent=51 // pred_check_branch
            %1044 = sbr.rel (%p1042) target = $region56
          $region55: #{classifier_forward.1} parent=51 // pred_region
            // Predicated region
            $region57: #{classifier_forward.1} parent=55 // pred_check
              _
            $region58: #{classifier_forward.1} parent=55 // pred_check_branch
              %1046 = sbr.rel (0) target = $region60
            $region59: #{classifier_forward.1} parent=55 // pred_region
              // Predicated region
              $region79: #{classifier_forward.1} parent=59 // pred_check
                _
              $region80: #{classifier_forward.1} parent=59 // pred_check_branch
                %1134 = sbr.rel (0) target = $region82
              $region81: #{classifier_forward.1} parent=59 // pred_region
                %s1135 = sdiv.u32.pop %s1037, 20
                %s1136 = srem.u32.pop %s1037, 20
                // While loop
                $region83: #{classifier_forward.1} parent=81 // loop_pre_header
                  _
                $region84: #{classifier_forward.1} parent=81 // loop_header
                  %s1138 = sphi 0, %s1140
                  %p1139 = scmp.ge.s32.totalorder %s1138, %s1135
                  %s1143 = sphi 0, %s1188
                  %s1144 = sphi %s1030, %s1191
                  %s1145 = sphi %s1041, %s1192
                $region85: #{classifier_forward.1} parent=81 // loop_header_branch
                  %1142 = sbr.rel (%p1139) target = $region89
                $region86: #{classifier_forward.1} parent=81 // loop_body
                  %v1146 = vld [vmem:[%s1144] sm:$0xff]
                  %1147 = vst [vmem:[%s1145] sm:$0xff] %v1146
                  %v1148 = vld [vmem:[%s1144 + $0x8] sm:$0xff]
                  %1149 = vst [vmem:[%s1145 + $0x8] sm:$0xff] %v1148
                  %v1150 = vld [vmem:[%s1144 + $0x10] sm:$0xff]
                  %1151 = vst [vmem:[%s1145 + $0x10] sm:$0xff] %v1150
                  %v1152 = vld [vmem:[%s1144 + $0x18] sm:$0xff]
                  %1153 = vst [vmem:[%s1145 + $0x18] sm:$0xff] %v1152
                  %v1154 = vld [vmem:[%s1144 + $0x20] sm:$0xff]
                  %1155 = vst [vmem:[%s1145 + $0x20] sm:$0xff] %v1154
                  %v1156 = vld [vmem:[%s1144 + $0x28] sm:$0xff]
                  %1157 = vst [vmem:[%s1145 + $0x28] sm:$0xff] %v1156
                  %v1158 = vld [vmem:[%s1144 + $0x30] sm:$0xff]
                  %1159 = vst [vmem:[%s1145 + $0x30] sm:$0xff] %v1158
                  %v1160 = vld [vmem:[%s1144 + $0x38] sm:$0xff]
                  %1161 = vst [vmem:[%s1145 + $0x38] sm:$0xff] %v1160
                  %v1162 = vld [vmem:[%s1144 + $0x40] sm:$0xff]
                  %1163 = vst [vmem:[%s1145 + $0x40] sm:$0xff] %v1162
                  %v1164 = vld [vmem:[%s1144 + $0x48] sm:$0xff]
                  %1165 = vst [vmem:[%s1145 + $0x48] sm:$0xff] %v1164
                  %v1166 = vld [vmem:[%s1144 + $0x50] sm:$0xff]
                  %1167 = vst [vmem:[%s1145 + $0x50] sm:$0xff] %v1166
                  %v1168 = vld [vmem:[%s1144 + $0x58] sm:$0xff]
                  %1169 = vst [vmem:[%s1145 + $0x58] sm:$0xff] %v1168
                  %v1170 = vld [vmem:[%s1144 + $0x60] sm:$0xff]
                  %1171 = vst [vmem:[%s1145 + $0x60] sm:$0xff] %v1170
                  %v1172 = vld [vmem:[%s1144 + $0x68] sm:$0xff]
                  %1173 = vst [vmem:[%s1145 + $0x68] sm:$0xff] %v1172
                  %v1174 = vld [vmem:[%s1144 + $0x70] sm:$0xff]
                  %1175 = vst [vmem:[%s1145 + $0x70] sm:$0xff] %v1174
                  %v1176 = vld [vmem:[%s1144 + $0x78] sm:$0xff]
                  %1177 = vst [vmem:[%s1145 + $0x78] sm:$0xff] %v1176
                  %v1178 = vld [vmem:[%s1144 + $0x80] sm:$0xff]
                  %1179 = vst [vmem:[%s1145 + $0x80] sm:$0xff] %v1178
                  %v1180 = vld [vmem:[%s1144 + $0x88] sm:$0xff]
                  %1181 = vst [vmem:[%s1145 + $0x88] sm:$0xff] %v1180
                  %v1182 = vld [vmem:[%s1144 + $0x90] sm:$0xff]
                  %1183 = vst [vmem:[%s1145 + $0x90] sm:$0xff] %v1182
                  %v1184 = vld [vmem:[%s1144 + $0x98] sm:$0xff]
                  %1185 = vst [vmem:[%s1145 + $0x98] sm:$0xff] %v1184
                  %s1186 = sadd.s32 1, %s1143
                  %p1187 = scmp.ge.s32.totalorder %s1186, %s1135
                  %s1188 = scalar_select %p1187, 0, %s1186
                  %s1189 = smul.u32 %s1188, 160
                  %s1190 = smul.u32 %s1188, 160
                  %s1191 = scalar_lea.vmem %s1030, %s1189 [#allocation2]
                  %s1192 = scalar_lea.vmem %s1041, %s1190
                $region87: #{classifier_forward.1} parent=81 // loop_footer
                  %s1140 = sadd.s32 %s1138, 1
                $region88: #{classifier_forward.1} parent=81 // loop_footer_branch
                  %1137 = sbr.rel target = $region84
                $region89: #{classifier_forward.1} parent=81 // loop_exit
                  _
                %s1193 = sdiv.u32.pop %s1037, 20
                %s1194 = srem.u32.pop %s1037, 20
                %s1195 = smul.u32 %s1193, 20
                %s1196 = smul.u32 8, %s1195
                %s1197 = scalar_lea.vmem %s1030, %s1196 [#allocation2]
                %s1198 = smul.u32 8, %s1195
                %s1199 = scalar_lea.vmem %s1041, %s1198
                // While loop
                $region90: #{classifier_forward.1} parent=81 // loop_pre_header
                  _
                $region91: #{classifier_forward.1} parent=81 // loop_header
                  %s1201 = sphi 0, %s1203
                  %p1202 = scmp.ge.s32.totalorder %s1201, %s1194
                  %s1206 = sphi 0, %s1213
                  %s1207 = sphi %s1197, %s1216
                  %s1208 = sphi %s1199, %s1217
                $region92: #{classifier_forward.1} parent=81 // loop_header_branch
                  %1205 = sbr.rel (%p1202) target = $region96
                $region93: #{classifier_forward.1} parent=81 // loop_body
                  %v1209 = vld [vmem:[%s1207] sm:$0xff]
                  %1210 = vst [vmem:[%s1208] sm:$0xff] %v1209
                  %s1211 = sadd.s32 1, %s1206
                  %p1212 = scmp.ge.s32.totalorder %s1211, %s1194
                  %s1213 = scalar_select %p1212, 0, %s1211
                  %s1214 = smul.u32 %s1213, 8
                  %s1215 = smul.u32 %s1213, 8
                  %s1216 = scalar_lea.vmem %s1197, %s1214 [#allocation2]
                  %s1217 = scalar_lea.vmem %s1199, %s1215
                $region94: #{classifier_forward.1} parent=81 // loop_footer
                  %s1203 = sadd.s32 %s1201, 1
                $region95: #{classifier_forward.1} parent=81 // loop_footer_branch
                  %1200 = sbr.rel target = $region91
                $region96: #{classifier_forward.1} parent=81 // loop_exit
                  _
              $region82: #{classifier_forward.1} parent=59 // pred_fallthru
                _
              // Predicated region
              $region97: #{classifier_forward.1} parent=59 // pred_check
                _
              $region98: #{classifier_forward.1} parent=59 // pred_check_branch
                %1219 = sbr.rel target = $region100
              $region99: #{classifier_forward.1} parent=59 // pred_region
                _
              $region100: #{classifier_forward.1} parent=59 // pred_fallthru
                _
            $region60: #{classifier_forward.1} parent=55 // pred_fallthru
              _
            // Predicated region
            $region61: #{classifier_forward.1} parent=55 // pred_check
              _
            $region62: #{classifier_forward.1} parent=55 // pred_check_branch
              %1048 = sbr.rel target = $region64
            $region63: #{classifier_forward.1} parent=55 // pred_region
              %s1050 = sdiv.u32.pop %s1037, 20
              %s1051 = srem.u32.pop %s1037, 20
              // While loop
              $region65: #{classifier_forward.1} parent=63 // loop_pre_header
                _
              $region66: #{classifier_forward.1} parent=63 // loop_header
                %s1053 = sphi 0, %s1055
                %p1054 = scmp.ge.s32.totalorder %s1053, %s1050
                %s1058 = sphi 0, %s1103
                %s1059 = sphi %s1030, %s1106
                %s1060 = sphi %s1041, %s1107
              $region67: #{classifier_forward.1} parent=63 // loop_header_branch
                %1057 = sbr.rel (%p1054) target = $region71
              $region68: #{classifier_forward.1} parent=63 // loop_body
                %v1061 = vld [vmem:[%s1059] sm:$0xff]
                %1062 = vst [vmem:[%s1060] sm:$0xff] %v1061
                %v1063 = vld [vmem:[%s1059 + $0x8] sm:$0xff]
                %1064 = vst [vmem:[%s1060 + $0x8] sm:$0xff] %v1063
                %v1065 = vld [vmem:[%s1059 + $0x10] sm:$0xff]
                %1066 = vst [vmem:[%s1060 + $0x10] sm:$0xff] %v1065
                %v1067 = vld [vmem:[%s1059 + $0x18] sm:$0xff]
                %1068 = vst [vmem:[%s1060 + $0x18] sm:$0xff] %v1067
                %v1069 = vld [vmem:[%s1059 + $0x20] sm:$0xff]
                %1070 = vst [vmem:[%s1060 + $0x20] sm:$0xff] %v1069
                %v1071 = vld [vmem:[%s1059 + $0x28] sm:$0xff]
                %1072 = vst [vmem:[%s1060 + $0x28] sm:$0xff] %v1071
                %v1073 = vld [vmem:[%s1059 + $0x30] sm:$0xff]
                %1074 = vst [vmem:[%s1060 + $0x30] sm:$0xff] %v1073
                %v1075 = vld [vmem:[%s1059 + $0x38] sm:$0xff]
                %1076 = vst [vmem:[%s1060 + $0x38] sm:$0xff] %v1075
                %v1077 = vld [vmem:[%s1059 + $0x40] sm:$0xff]
                %1078 = vst [vmem:[%s1060 + $0x40] sm:$0xff] %v1077
                %v1079 = vld [vmem:[%s1059 + $0x48] sm:$0xff]
                %1080 = vst [vmem:[%s1060 + $0x48] sm:$0xff] %v1079
                %v1081 = vld [vmem:[%s1059 + $0x50] sm:$0xff]
                %1082 = vst [vmem:[%s1060 + $0x50] sm:$0xff] %v1081
                %v1083 = vld [vmem:[%s1059 + $0x58] sm:$0xff]
                %1084 = vst [vmem:[%s1060 + $0x58] sm:$0xff] %v1083
                %v1085 = vld [vmem:[%s1059 + $0x60] sm:$0xff]
                %1086 = vst [vmem:[%s1060 + $0x60] sm:$0xff] %v1085
                %v1087 = vld [vmem:[%s1059 + $0x68] sm:$0xff]
                %1088 = vst [vmem:[%s1060 + $0x68] sm:$0xff] %v1087
                %v1089 = vld [vmem:[%s1059 + $0x70] sm:$0xff]
                %1090 = vst [vmem:[%s1060 + $0x70] sm:$0xff] %v1089
                %v1091 = vld [vmem:[%s1059 + $0x78] sm:$0xff]
                %1092 = vst [vmem:[%s1060 + $0x78] sm:$0xff] %v1091
                %v1093 = vld [vmem:[%s1059 + $0x80] sm:$0xff]
                %1094 = vst [vmem:[%s1060 + $0x80] sm:$0xff] %v1093
                %v1095 = vld [vmem:[%s1059 + $0x88] sm:$0xff]
                %1096 = vst [vmem:[%s1060 + $0x88] sm:$0xff] %v1095
                %v1097 = vld [vmem:[%s1059 + $0x90] sm:$0xff]
                %1098 = vst [vmem:[%s1060 + $0x90] sm:$0xff] %v1097
                %v1099 = vld [vmem:[%s1059 + $0x98] sm:$0xff]
                %1100 = vst [vmem:[%s1060 + $0x98] sm:$0xff] %v1099
                %s1101 = sadd.s32 1, %s1058
                %p1102 = scmp.ge.s32.totalorder %s1101, %s1050
                %s1103 = scalar_select %p1102, 0, %s1101
                %s1104 = smul.u32 %s1103, 160
                %s1105 = smul.u32 %s1103, 160
                %s1106 = scalar_lea.vmem %s1030, %s1104 [#allocation2]
                %s1107 = scalar_lea.vmem %s1041, %s1105
              $region69: #{classifier_forward.1} parent=63 // loop_footer
                %s1055 = sadd.s32 %s1053, 1
              $region70: #{classifier_forward.1} parent=63 // loop_footer_branch
                %1052 = sbr.rel target = $region66
              $region71: #{classifier_forward.1} parent=63 // loop_exit
                _
              %s1108 = sdiv.u32.pop %s1037, 20
              %s1109 = srem.u32.pop %s1037, 20
              %s1110 = smul.u32 %s1108, 20
              %s1111 = smul.u32 8, %s1110
              %s1112 = scalar_lea.vmem %s1030, %s1111 [#allocation2]
              %s1113 = smul.u32 8, %s1110
              %s1114 = scalar_lea.vmem %s1041, %s1113
              // While loop
              $region72: #{classifier_forward.1} parent=63 // loop_pre_header
                _
              $region73: #{classifier_forward.1} parent=63 // loop_header
                %s1116 = sphi 0, %s1118
                %p1117 = scmp.ge.s32.totalorder %s1116, %s1109
                %s1121 = sphi 0, %s1128
                %s1122 = sphi %s1112, %s1131
                %s1123 = sphi %s1114, %s1132
              $region74: #{classifier_forward.1} parent=63 // loop_header_branch
                %1120 = sbr.rel (%p1117) target = $region78
              $region75: #{classifier_forward.1} parent=63 // loop_body
                %v1124 = vld [vmem:[%s1122] sm:$0xff]
                %1125 = vst [vmem:[%s1123] sm:$0xff] %v1124
                %s1126 = sadd.s32 1, %s1121
                %p1127 = scmp.ge.s32.totalorder %s1126, %s1109
                %s1128 = scalar_select %p1127, 0, %s1126
                %s1129 = smul.u32 %s1128, 8
                %s1130 = smul.u32 %s1128, 8
                %s1131 = scalar_lea.vmem %s1112, %s1129 [#allocation2]
                %s1132 = scalar_lea.vmem %s1114, %s1130
              $region76: #{classifier_forward.1} parent=63 // loop_footer
                %s1118 = sadd.s32 %s1116, 1
              $region77: #{classifier_forward.1} parent=63 // loop_footer_branch
                %1115 = sbr.rel target = $region73
              $region78: #{classifier_forward.1} parent=63 // loop_exit
                _
            $region64: #{classifier_forward.1} parent=55 // pred_fallthru
              _
          $region56: #{classifier_forward.1} parent=51 // pred_fallthru
            _
          %1220 = vnop
        $region52: #{classifier_forward.1} parent=47 // pred_fallthru
          _
      $region48: #{classifier_forward.1} parent=5 // pred_fallthru
        _
      %p1221 = scmp.le.s32.totalorder 2, %s13
      // Predicated region
      $region101: #{classifier_forward.1} parent=5 // pred_check
        %p1222 = pneg %p1221
      $region102: #{classifier_forward.1} parent=5 // pred_check_branch
        %1224 = sbr.rel (%p1222) target = $region104
      $region103: #{classifier_forward.1} parent=5 // pred_region
        %s1225 = ssub.s32 %s13, 2
        // Predicated region
        $region105: #{classifier_forward.1} parent=103 // pred_check
          %p1226 = pneg %p194
        $region106: #{classifier_forward.1} parent=103 // pred_check_branch
          %1228 = sbr.rel (%p1226) target = $region108
        $region107: #{classifier_forward.1} parent=103 // pred_region
          %s1229 = sand.u32 %s179, 1
          %s1230 = sand.u32 %s179, 1
          %s1231 = smul.addr %s1230, 160
          %s1232 = scalar_lea.vmem [#allocation2], %s1231
        $region108: #{classifier_forward.1} parent=103 // pred_fallthru
          _
      $region104: #{classifier_forward.1} parent=5 // pred_fallthru
        _
    $region6: #{classifier_forward.1} parent=1 // loop_footer
      %s17 = sadd.s32 1, %s13
    $region7: #{classifier_forward.1} parent=1 // loop_footer_branch
      %12 = sbr.rel target = $region3
    $region8: #{classifier_forward.1} parent=1 // loop_exit
      _

</llo_original>
